<compile_context>
chip_gen: v5e
topology: v5e:2x2
jax: 0.10.0
libtpu: 0.0.40
codegen_flags: <defaults>
</compile_context>

<pallas_src>
import functools

import jax
import jax.numpy as jnp
from jax.experimental import pallas as pl
from jax.experimental.pallas import tpu as pltpu


# ---------------------------------------------------------------------------
# Kernels
# ---------------------------------------------------------------------------
def _layernorm_kernel_plain(x_ref, a_ref, b_ref, o_ref, *, eps):
    """One block = (tile_rows, features); reduction over the full last axis."""
    x = x_ref[...].astype(jnp.float32)
    n = x.shape[-1]
    mean = jnp.mean(x, axis=-1, keepdims=True)
    d = x - mean
    # torch.std default is unbiased (ddof=1); std**2 + eps == unbiased var + eps.
    var = jnp.sum(d * d, axis=-1, keepdims=True) * (1.0 / float(max(n - 1, 1)))
    # TODO(synk): features == 1 diverges from torch (torch: NaN from 0/0; here: b_2).
    y = d * jax.lax.rsqrt(var + eps)
    a = a_ref[...].astype(jnp.float32)
    b = b_ref[...].astype(jnp.float32)
    o_ref[...] = (a * y + b).astype(o_ref.dtype)


def _layernorm_kernel_packed(x_ref, a_ref, b_ref, o_ref, *, eps, features, pack):
    """Lane-packed block: each physical row holds `pack` logical rows of
    `features` values (pack * features == 128), so vregs and output stores are
    lane-dense.  Per-segment reductions use masked full-lane sums in f32 (the
    extra VPU/XLU work is hidden under the HBM-bound DMA)."""
    x = x_ref[...].astype(jnp.float32)                       # (T, pack*features)
    kf = x.shape[-1]
    lane = jax.lax.broadcasted_iota(jnp.int32, (1, kf), 1)
    masks = [
        jnp.logical_and(lane >= s * features, lane < (s + 1) * features)
        .astype(jnp.float32)
        for s in range(pack)
    ]

    inv_n = 1.0 / float(features)
    inv_nm1 = 1.0 / float(max(features - 1, 1))

    mean = jnp.zeros_like(x)
    for m in masks:
        mean = mean + m * jnp.sum(x * m, axis=-1, keepdims=True)
    mean = mean * inv_n

    d = x - mean
    d2 = d * d
    var = jnp.zeros_like(x)
    for m in masks:
        var = var + m * jnp.sum(d2 * m, axis=-1, keepdims=True)
    var = var * inv_nm1

    y = d * jax.lax.rsqrt(var + eps)
    a = a_ref[...].astype(jnp.float32)
    b = b_ref[...].astype(jnp.float32)
    o_ref[...] = (a * y + b).astype(o_ref.dtype)


# ---------------------------------------------------------------------------
# Tuning helpers
# ---------------------------------------------------------------------------
def _tpu_tuning():
    """Per-generation (target_block_bytes, vmem_limit_bytes, num_tensorcores)."""
    kind = ""
    try:
        kind = jax.devices()[0].device_kind.lower()
    except Exception:  # pragma: no cover
        pass
    if "v7" in kind:   # 64 MiB VMEM, ~3.2 TB/s HBM, 2 TensorCores per chip
        return 4 * 1024 * 1024, 48 * 1024 * 1024, 2
    if "v6" in kind:   # 128 MiB VMEM, ~1.4 TB/s HBM
        return 4 * 1024 * 1024, 96 * 1024 * 1024, 1
    if "v5" in kind:   # v5e/v5p: per-step overhead already small vs 2 MiB blocks
        return 2 * 1024 * 1024, 64 * 1024 * 1024, 1
    return 2 * 1024 * 1024, 32 * 1024 * 1024, 1


def _vmem_bytes_per_row(features, itemsize):
    # Double-buffered input + output blocks (input dtype) plus ~3 full-width f32
    # temps (x32, d/d2, y) live during compute.
    return features * (4 * itemsize + 3 * 4)


def _pick_tile_rows(rows, features, dtype, *, target_bytes, num_cores):
    itemsize = jnp.dtype(dtype).itemsize
    sublane = {1: 32, 2: 16, 4: 8}.get(itemsize, 8)
    per_row = _vmem_bytes_per_row(features, itemsize)
    tile = max((target_bytes // max(per_row, 1)) // sublane * sublane, sublane)
    if num_cores > 1 and rows >= 2 * num_cores * sublane:
        # The "parallel" grid axis is sharded across TensorCores; keep >= 2
        # steps per core so each core's pipeline still double-buffers.
        cap = max((rows // (2 * num_cores)) // sublane * sublane, sublane)
        tile = min(tile, cap)
    if tile >= rows:
        tile = rows  # single full-extent block is always a legal block shape
    return int(tile)


def _layer_norm_xla(x, a_2, b_2, eps):
    # TODO(synk): feature-axis tiling for extreme widths; plain XLA fallback now.
    x32 = x.astype(jnp.float32)
    mean = jnp.mean(x32, axis=-1, keepdims=True)
    d = x32 - mean
    var = jnp.sum(d * d, axis=-1, keepdims=True) / float(max(x.shape[-1] - 1, 1))
    return (a_2 * d * jax.lax.rsqrt(var + eps) + b_2).astype(x.dtype)


def _run(kernel, x2, a2, b2, tile_rows, vmem_limit):
    rows, width = x2.shape
    grid = (pl.cdiv(rows, tile_rows),)
    return pl.pallas_call(
        kernel,
        out_shape=jax.ShapeDtypeStruct((rows, width), x2.dtype),
        grid=grid,
        in_specs=[
            pl.BlockSpec((tile_rows, width), lambda i: (i, 0)),
            pl.BlockSpec((1, width), lambda i: (0, 0)),
            pl.BlockSpec((1, width), lambda i: (0, 0)),
        ],
        out_specs=pl.BlockSpec((tile_rows, width), lambda i: (i, 0)),
        compiler_params=pltpu.CompilerParams(
            dimension_semantics=("parallel",),
            vmem_limit_bytes=vmem_limit,
        ),
    )(x2, a2, b2)


# ---------------------------------------------------------------------------
# Public wrapper
# ---------------------------------------------------------------------------
def layer_norm(x, a_2, b_2, eps=1e-6, *, tile_rows=None):
    """x: [..., features]; a_2, b_2: [features]."""
    features = x.shape[-1]
    orig_shape = x.shape
    x2 = x.reshape(-1, features)
    rows = x2.shape[0]

    target_bytes, vmem_limit, num_cores = _tpu_tuning()
    itemsize = jnp.dtype(x2.dtype).itemsize
    sublane = {1: 32, 2: 16, 4: 8}.get(itemsize, 8)

    # Extreme feature dims: even one sublane-high block (+ f32 temps) would not
    # fit the VMEM budget -> fall back to XLA instead of failing to compile.
    if _vmem_bytes_per_row(features, itemsize) * sublane > vmem_limit // 2:
        return _layer_norm_xla(x, a_2, b_2, eps)

    # Lane packing for sub-128 feature dims that divide 128.
    pack = 128 // features if (8 <= features < 128 and 128 % features == 0) else 1

    if pack > 1:
        rows_p = -(-rows // pack)
        pad = rows_p * pack - rows
        if pad:
            # Extra HBM pass only when rows % pack != 0; padded segments
            # normalize independently and are sliced off below.
            x2 = jnp.pad(x2, ((0, pad), (0, 0)))
        kf = pack * features
        xp = x2.reshape(rows_p, kf)
        ap = jnp.tile(a_2.reshape(-1), pack).reshape(1, kf)
        bp = jnp.tile(b_2.reshape(-1), pack).reshape(1, kf)
        tr = tile_rows if tile_rows is not None else _pick_tile_rows(
            rows_p, kf, xp.dtype, target_bytes=target_bytes, num_cores=num_cores)
        kern = functools.partial(_layernorm_kernel_packed, eps=eps,
                                 features=features, pack=pack)
        out = _run(kern, xp, ap, bp, tr, vmem_limit)
        out = out.reshape(rows_p * pack, features)
        if pad:
            out = out[:rows]
        return out.reshape(orig_shape)

    a2 = a_2.reshape(1, features)
    b2 = b_2.reshape(1, features)
    tr = tile_rows if tile_rows is not None else _pick_tile_rows(
        rows, features, x2.dtype, target_bytes=target_bytes, num_cores=num_cores)
    kern = functools.partial(_layernorm_kernel_plain, eps=eps)
    out = _run(kern, x2, a2, b2, tr, vmem_limit)
    return out.reshape(orig_shape)


# ---------------------------------------------------------------------------
# Reference & demo
# ---------------------------------------------------------------------------
def _reference(x, a_2, b_2, eps=1e-6):
    x32 = x.astype(jnp.float32)
    mean = jnp.mean(x32, axis=-1, keepdims=True)
    std = jnp.std(x32, axis=-1, keepdims=True, ddof=1)  # torch unbiased std
    return (a_2 * (x32 - mean) / jnp.sqrt(std**2 + eps) + b_2).astype(x.dtype)


if __name__ == "__main__":
    key = jax.random.PRNGKey(0)
    batch, seq, features = 2, 8, 32

    kx, ka, kb = jax.random.split(key, 3)
    x = jax.random.normal(kx, (batch, seq, features), dtype=jnp.float32)
    # Module __init__: a_2 = ones(features), b_2 = zeros(features); perturb
    # deterministically so scale/shift are actually exercised.
    a_2 = jnp.ones((features,), jnp.float32) + 0.1 * jax.random.normal(ka, (features,))
    b_2 = jnp.zeros((features,), jnp.float32) + 0.1 * jax.random.normal(kb, (features,))

    out = jax.block_until_ready(layer_norm(x, a_2, b_2, eps=1e-6))
    ref = _reference(x, a_2, b_2, eps=1e-6)
    assert out.shape == x.shape and out.dtype == x.dtype
    assert jnp.allclose(out, ref, atol=1e-5, rtol=1e-5), "mismatch (packed path)"

    # Non-divisible row count + multi-step grid with a partial last block
    # (lane-packed path, row padding exercised).
    x_big = jax.random.normal(kx, (3, 77, features), dtype=jnp.float32)
    out_big = jax.block_until_ready(layer_norm(x_big, a_2, b_2, eps=1e-6, tile_rows=16))
    assert jnp.allclose(out_big, _reference(x_big, a_2, b_2, eps=1e-6),
                        atol=1e-5, rtol=1e-5), "mismatch (packed, partial block)"

    # Plain (features >= 128) path, multi-step grid.
    f2 = 256
    kx2, ka2, kb2 = jax.random.split(jax.random.PRNGKey(0), 3)
    x_p = jax.random.normal(kx2, (2, 8, f2), dtype=jnp.float32)
    a_p = jnp.ones((f2,), jnp.float32) + 0.1 * jax.random.normal(ka2, (f2,))
    b_p = jnp.zeros((f2,), jnp.float32) + 0.1 * jax.random.normal(kb2, (f2,))
    out_p = jax.block_until_ready(layer_norm(x_p, a_p, b_p, eps=1e-6, tile_rows=8))
    assert jnp.allclose(out_p, _reference(x_p, a_p, b_p, eps=1e-6),
                        atol=1e-5, rtol=1e-5), "mismatch (plain path)"

    print("KERNEL_OK")
</pallas_src>

<mosaic_0001>
module attributes {stable_mosaic.version = 11 : i64} {
  func.func @_layernorm_kernel_packed(%arg0: i32, %arg1: memref<4x128xf32, #tpu.memory_space<vmem>>, %arg2: memref<1x128xf32, #tpu.memory_space<vmem>>, %arg3: memref<1x128xf32, #tpu.memory_space<vmem>>, %arg4: memref<4x128xf32, #tpu.memory_space<vmem>>) attributes {dimension_semantics = [#tpu.dimension_semantics<parallel>], iteration_bounds = array<i64: 1>, scalar_prefetch = 0 : i64, scratch_operands = 0 : i64, tpu.core_type = #tpu.core_type<tc>, window_params = [{transform_indices = @transform_0, window_bounds = array<i64: 4, 128>}, {pipeline_mode = #tpu.pipeline_mode<synchronous>, transform_indices = @transform_1, window_bounds = array<i64: 1, 128>}, {pipeline_mode = #tpu.pipeline_mode<synchronous>, transform_indices = @transform_2, window_bounds = array<i64: 1, 128>}, {transform_indices = @transform_3, window_bounds = array<i64: 4, 128>}]} {
    %c0 = arith.constant 0 : index
    %c0_0 = arith.constant 0 : index
    %0 = vector.load %arg1[%c0, %c0_0] : memref<4x128xf32, #tpu.memory_space<vmem>>, vector<4x128xf32>
    %1 = tpu.iota {dimensions = array<i32: 1>} : vector<1x128xi32>
    %c0_i32 = arith.constant 0 : i32
    %2 = vector.broadcast %c0_i32 : i32 to vector<1x128xi32>
    %3 = arith.cmpi sge, %1, %2 : vector<1x128xi32>
    %c32_i32 = arith.constant 32 : i32
    %4 = vector.broadcast %c32_i32 : i32 to vector<1x128xi32>
    %5 = arith.cmpi slt, %1, %4 : vector<1x128xi32>
    %6 = arith.andi %3, %5 : vector<1x128xi1>
    %7 = arith.extui %6 : vector<1x128xi1> to vector<1x128xi32>
    %8 = arith.sitofp %7 : vector<1x128xi32> to vector<1x128xf32>
    %c32_i32_1 = arith.constant 32 : i32
    %9 = vector.broadcast %c32_i32_1 : i32 to vector<1x128xi32>
    %10 = arith.cmpi sge, %1, %9 : vector<1x128xi32>
    %c64_i32 = arith.constant 64 : i32
    %11 = vector.broadcast %c64_i32 : i32 to vector<1x128xi32>
    %12 = arith.cmpi slt, %1, %11 : vector<1x128xi32>
    %13 = arith.andi %10, %12 : vector<1x128xi1>
    %14 = arith.extui %13 : vector<1x128xi1> to vector<1x128xi32>
    %15 = arith.sitofp %14 : vector<1x128xi32> to vector<1x128xf32>
    %c64_i32_2 = arith.constant 64 : i32
    %16 = vector.broadcast %c64_i32_2 : i32 to vector<1x128xi32>
    %17 = arith.cmpi sge, %1, %16 : vector<1x128xi32>
    %c96_i32 = arith.constant 96 : i32
    %18 = vector.broadcast %c96_i32 : i32 to vector<1x128xi32>
    %19 = arith.cmpi slt, %1, %18 : vector<1x128xi32>
    %20 = arith.andi %17, %19 : vector<1x128xi1>
    %21 = arith.extui %20 : vector<1x128xi1> to vector<1x128xi32>
    %22 = arith.sitofp %21 : vector<1x128xi32> to vector<1x128xf32>
    %c96_i32_3 = arith.constant 96 : i32
    %23 = vector.broadcast %c96_i32_3 : i32 to vector<1x128xi32>
    %24 = arith.cmpi sge, %1, %23 : vector<1x128xi32>
    %c128_i32 = arith.constant 128 : i32
    %25 = vector.broadcast %c128_i32 : i32 to vector<1x128xi32>
    %26 = arith.cmpi slt, %1, %25 : vector<1x128xi32>
    %27 = arith.andi %24, %26 : vector<1x128xi1>
    %28 = arith.extui %27 : vector<1x128xi1> to vector<1x128xi32>
    %29 = arith.sitofp %28 : vector<1x128xi32> to vector<1x128xf32>
    %cst = arith.constant 0.000000e+00 : f32
    %30 = vector.broadcast %cst : f32 to vector<4x128xf32>
    %31 = vector.broadcast %8 : vector<1x128xf32> to vector<4x128xf32>
    %32 = arith.mulf %0, %31 : vector<4x128xf32>
    %cst_4 = arith.constant dense<0.000000e+00> : vector<4xf32>
    %33 = vector.multi_reduction <add>, %32, %cst_4 [1] : vector<4x128xf32> to vector<4xf32>
    %34 = vector.shape_cast %33 : vector<4xf32> to vector<4x1xf32>
    %35 = vector.broadcast %8 : vector<1x128xf32> to vector<4x128xf32>
    %36 = vector.broadcast %34 : vector<4x1xf32> to vector<4x128xf32>
    %37 = arith.mulf %35, %36 : vector<4x128xf32>
    %38 = arith.addf %30, %37 : vector<4x128xf32>
    %39 = vector.broadcast %15 : vector<1x128xf32> to vector<4x128xf32>
    %40 = arith.mulf %0, %39 : vector<4x128xf32>
    %cst_5 = arith.constant dense<0.000000e+00> : vector<4xf32>
    %41 = vector.multi_reduction <add>, %40, %cst_5 [1] : vector<4x128xf32> to vector<4xf32>
    %42 = vector.shape_cast %41 : vector<4xf32> to vector<4x1xf32>
    %43 = vector.broadcast %15 : vector<1x128xf32> to vector<4x128xf32>
    %44 = vector.broadcast %42 : vector<4x1xf32> to vector<4x128xf32>
    %45 = arith.mulf %43, %44 : vector<4x128xf32>
    %46 = arith.addf %38, %45 : vector<4x128xf32>
    %47 = vector.broadcast %22 : vector<1x128xf32> to vector<4x128xf32>
    %48 = arith.mulf %0, %47 : vector<4x128xf32>
    %cst_6 = arith.constant dense<0.000000e+00> : vector<4xf32>
    %49 = vector.multi_reduction <add>, %48, %cst_6 [1] : vector<4x128xf32> to vector<4xf32>
    %50 = vector.shape_cast %49 : vector<4xf32> to vector<4x1xf32>
    %51 = vector.broadcast %22 : vector<1x128xf32> to vector<4x128xf32>
    %52 = vector.broadcast %50 : vector<4x1xf32> to vector<4x128xf32>
    %53 = arith.mulf %51, %52 : vector<4x128xf32>
    %54 = arith.addf %46, %53 : vector<4x128xf32>
    %55 = vector.broadcast %29 : vector<1x128xf32> to vector<4x128xf32>
    %56 = arith.mulf %0, %55 : vector<4x128xf32>
    %cst_7 = arith.constant dense<0.000000e+00> : vector<4xf32>
    %57 = vector.multi_reduction <add>, %56, %cst_7 [1] : vector<4x128xf32> to vector<4xf32>
    %58 = vector.shape_cast %57 : vector<4xf32> to vector<4x1xf32>
    %59 = vector.broadcast %29 : vector<1x128xf32> to vector<4x128xf32>
    %60 = vector.broadcast %58 : vector<4x1xf32> to vector<4x128xf32>
    %61 = arith.mulf %59, %60 : vector<4x128xf32>
    %62 = arith.addf %54, %61 : vector<4x128xf32>
    %cst_8 = arith.constant 3.125000e-02 : f32
    %63 = vector.broadcast %cst_8 : f32 to vector<4x128xf32>
    %64 = arith.mulf %62, %63 : vector<4x128xf32>
    %65 = arith.subf %0, %64 : vector<4x128xf32>
    %66 = arith.mulf %65, %65 : vector<4x128xf32>
    %cst_9 = arith.constant 0.000000e+00 : f32
    %67 = vector.broadcast %cst_9 : f32 to vector<4x128xf32>
    %68 = vector.broadcast %8 : vector<1x128xf32> to vector<4x128xf32>
    %69 = arith.mulf %66, %68 : vector<4x128xf32>
    %cst_10 = arith.constant dense<0.000000e+00> : vector<4xf32>
    %70 = vector.multi_reduction <add>, %69, %cst_10 [1] : vector<4x128xf32> to vector<4xf32>
    %71 = vector.shape_cast %70 : vector<4xf32> to vector<4x1xf32>
    %72 = vector.broadcast %8 : vector<1x128xf32> to vector<4x128xf32>
    %73 = vector.broadcast %71 : vector<4x1xf32> to vector<4x128xf32>
    %74 = arith.mulf %72, %73 : vector<4x128xf32>
    %75 = arith.addf %67, %74 : vector<4x128xf32>
    %76 = vector.broadcast %15 : vector<1x128xf32> to vector<4x128xf32>
    %77 = arith.mulf %66, %76 : vector<4x128xf32>
    %cst_11 = arith.constant dense<0.000000e+00> : vector<4xf32>
    %78 = vector.multi_reduction <add>, %77, %cst_11 [1] : vector<4x128xf32> to vector<4xf32>
    %79 = vector.shape_cast %78 : vector<4xf32> to vector<4x1xf32>
    %80 = vector.broadcast %15 : vector<1x128xf32> to vector<4x128xf32>
    %81 = vector.broadcast %79 : vector<4x1xf32> to vector<4x128xf32>
    %82 = arith.mulf %80, %81 : vector<4x128xf32>
    %83 = arith.addf %75, %82 : vector<4x128xf32>
    %84 = vector.broadcast %22 : vector<1x128xf32> to vector<4x128xf32>
    %85 = arith.mulf %66, %84 : vector<4x128xf32>
    %cst_12 = arith.constant dense<0.000000e+00> : vector<4xf32>
    %86 = vector.multi_reduction <add>, %85, %cst_12 [1] : vector<4x128xf32> to vector<4xf32>
    %87 = vector.shape_cast %86 : vector<4xf32> to vector<4x1xf32>
    %88 = vector.broadcast %22 : vector<1x128xf32> to vector<4x128xf32>
    %89 = vector.broadcast %87 : vector<4x1xf32> to vector<4x128xf32>
    %90 = arith.mulf %88, %89 : vector<4x128xf32>
    %91 = arith.addf %83, %90 : vector<4x128xf32>
    %92 = vector.broadcast %29 : vector<1x128xf32> to vector<4x128xf32>
    %93 = arith.mulf %66, %92 : vector<4x128xf32>
    %cst_13 = arith.constant dense<0.000000e+00> : vector<4xf32>
    %94 = vector.multi_reduction <add>, %93, %cst_13 [1] : vector<4x128xf32> to vector<4xf32>
    %95 = vector.shape_cast %94 : vector<4xf32> to vector<4x1xf32>
    %96 = vector.broadcast %29 : vector<1x128xf32> to vector<4x128xf32>
    %97 = vector.broadcast %95 : vector<4x1xf32> to vector<4x128xf32>
    %98 = arith.mulf %96, %97 : vector<4x128xf32>
    %99 = arith.addf %91, %98 : vector<4x128xf32>
    %cst_14 = arith.constant 0.0322580636 : f32
    %100 = vector.broadcast %cst_14 : f32 to vector<4x128xf32>
    %101 = arith.mulf %99, %100 : vector<4x128xf32>
    %cst_15 = arith.constant 9.99999997E-7 : f32
    %102 = vector.broadcast %cst_15 : f32 to vector<4x128xf32>
    %103 = arith.addf %101, %102 : vector<4x128xf32>
    %104 = math.rsqrt %103 : vector<4x128xf32>
    %105 = arith.mulf %65, %104 : vector<4x128xf32>
    %c0_16 = arith.constant 0 : index
    %c0_17 = arith.constant 0 : index
    %106 = vector.load %arg2[%c0_16, %c0_17] : memref<1x128xf32, #tpu.memory_space<vmem>>, vector<1x128xf32>
    %c0_18 = arith.constant 0 : index
    %c0_19 = arith.constant 0 : index
    %107 = vector.load %arg3[%c0_18, %c0_19] : memref<1x128xf32, #tpu.memory_space<vmem>>, vector<1x128xf32>
    %108 = vector.broadcast %106 : vector<1x128xf32> to vector<4x128xf32>
    %109 = arith.mulf %108, %105 : vector<4x128xf32>
    %110 = vector.broadcast %107 : vector<1x128xf32> to vector<4x128xf32>
    %111 = arith.addf %109, %110 : vector<4x128xf32>
    %c0_20 = arith.constant 0 : index
    %c0_21 = arith.constant 0 : index
    %112 = vector.load %arg4[%c0_20, %c0_21] : memref<4x128xf32, #tpu.memory_space<vmem>>, vector<4x128xf32>
    tpu.vector_store %arg4[%c0_20, %c0_21], %111 {strides = array<i32>} : memref<4x128xf32, #tpu.memory_space<vmem>>, vector<4x128xf32>,
    return
  }
  func.func @transform_0(%arg0: i32) -> (i32, i32) {
    %c0_i32 = arith.constant 0 : i32
    %c0_i32_0 = arith.constant 0 : i32
    return %arg0, %c0_i32 : i32, i32
  }
  func.func @transform_1(%arg0: i32) -> (i32, i32) {
    %c0_i32 = arith.constant 0 : i32
    %c0_i32_0 = arith.constant 0 : i32
    %c0_i32_1 = arith.constant 0 : i32
    return %c0_i32, %c0_i32_0 : i32, i32
  }
  func.func @transform_2(%arg0: i32) -> (i32, i32) {
    %c0_i32 = arith.constant 0 : i32
    %c0_i32_0 = arith.constant 0 : i32
    %c0_i32_1 = arith.constant 0 : i32
    return %c0_i32, %c0_i32_0 : i32, i32
  }
  func.func @transform_3(%arg0: i32) -> (i32, i32) {
    %c0_i32 = arith.constant 0 : i32
    %c0_i32_0 = arith.constant 0 : i32
    return %arg0, %c0_i32 : i32, i32
  }
}

</mosaic_0001>

<llo_original>
// kernel: tpu_custom_call.1
$region0: #{tpu_custom_call.1}
  #allocation0 [shape = 'u32[]', space=smem, size = 0x4, offset = 0x4, fixed_abs, tag = 'smem constant byte address 0x4 - core index']
  #allocation1 [shape = 'u32[72,128]{1,0:T(1,128)}', space=vmem, size = 0x9000, scoped, tag = 'internal scratch']
  %s0 = inlined_call_operand.hbm [shape: f32[4,128], index: 0, kind: input, shape index: {}]
  %s1 = inlined_call_operand.hbm [shape: f32[1,128], index: 1, kind: input, shape index: {}]
  %s2 = inlined_call_operand.vmem [shape: f32[1,128], index: 2, kind: input, shape index: {}]
  %s3 = inlined_call_operand.hbm [shape: f32[4,128], index: 3, kind: output, shape index: {}]
  %s4 = sld [smem:[#allocation0]]
  $region30: #{tpu_custom_call.1} parent=0
    _
  %s6 = ssub.s32 1, %s4
  %s7 = scalar_select 0, %s6, %s4
  $region1: #{tpu_custom_call.1} parent=0
    #allocation2 [shape = 'u8[2048]{0}', space=vmem, size = 0x800, scoped, tag = 'input window, operand 0, single buffered']
    #allocation3 [shape = 's32[1]{0}', space=sflag, size = 0x4, scoped, tag = 'scoped memory for tpu_custom_call.1']
    #allocation4 [shape = 's32[1]{0}', space=sflag, size = 0x4, scoped, tag = 'scoped memory for tpu_custom_call.1']
    #allocation5 [shape = 'u8[512]{0}', space=vmem, size = 0x400, scoped, tag = 'input window, operand 1, single buffered']
    #allocation6 [shape = 's32[1]{0}', space=sflag, size = 0x4, scoped, tag = 'scoped memory for tpu_custom_call.1']
    #allocation7 [shape = 'u8[2048]{0}', space=vmem, size = 0x800, scoped, tag = 'output window, operand 0, single buffered']
    %8 = vsyncpa [#allocation3], 0
    %9 = vsyncpa [#allocation6], 0
    %10 = vsyncpa [#allocation4], 0
    // Predicated region
    $region2: #{tpu_custom_call.1} parent=1 // pred_check
      _
    $region3: #{tpu_custom_call.1} parent=1 // pred_check_branch
      %12 = sbr.rel (0) target = $region5
    $region4: #{tpu_custom_call.1} parent=1 // pred_region
      %14 = vsyncadd [#allocation3], 0
      %s16 = sshll.u32 %s0, 4
      %s17 = int_to_ptr.hbm [resolvable:$true] %s16
      %s18 = sshll.u32 [#allocation2], 4
      %s19 = int_to_ptr.vmem [resolvable:$true] %s18
      %21 = dma.hbm_to_vmem [thread:$0]  %s17, 64, %s19, [#allocation3]
    $region5: #{tpu_custom_call.1} parent=1 // pred_fallthru
      _
    // Predicated region
    $region6: #{tpu_custom_call.1} parent=1 // pred_check
      _
    $region7: #{tpu_custom_call.1} parent=1 // pred_check_branch
      %23 = sbr.rel (0) target = $region9
    $region8: #{tpu_custom_call.1} parent=1 // pred_region
      %25 = vsyncadd [#allocation6], 0
      %s27 = sshll.u32 %s1, 4
      %s28 = int_to_ptr.hbm [resolvable:$true] %s27
      %s29 = sshll.u32 [#allocation5], 4
      %s30 = int_to_ptr.vmem [resolvable:$true] %s29
      %32 = dma.hbm_to_vmem [thread:$0]  %s28, 16, %s30, [#allocation6]
    $region9: #{tpu_custom_call.1} parent=1 // pred_fallthru
      _
    // Predicated region
    $region10: #{tpu_custom_call.1} parent=1 // pred_check
      _
    $region11: #{tpu_custom_call.1} parent=1 // pred_check_branch
      %34 = sbr.rel (0) target = $region13
    $region12: #{tpu_custom_call.1} parent=1 // pred_region
      _
    $region13: #{tpu_custom_call.1} parent=1 // pred_fallthru
      _
    // Predicated region
    $region14: #{tpu_custom_call.1} parent=1 // pred_check
      _
    $region15: #{tpu_custom_call.1} parent=1 // pred_check_branch
      %36 = sbr.rel (0) target = $region17
    $region16: #{tpu_custom_call.1} parent=1 // pred_region
      %38 = dma.done [#allocation3], 64
    $region17: #{tpu_custom_call.1} parent=1 // pred_fallthru
      _
    // Predicated region
    $region18: #{tpu_custom_call.1} parent=1 // pred_check
      _
    $region19: #{tpu_custom_call.1} parent=1 // pred_check_branch
      %40 = sbr.rel (0) target = $region21
    $region20: #{tpu_custom_call.1} parent=1 // pred_region
      %42 = dma.done [#allocation6], 16
    $region21: #{tpu_custom_call.1} parent=1 // pred_fallthru
      _
    %v43 = vld [vmem:[#allocation2] sm:$0xf]
    %v44 = vlaneseq
    %v45 = vand.u32 %v44, 127
    %vm46 = vcmp.ge.s32.totalorder %v45, 0
    %vm47 = vcmp.lt.s32.totalorder %v45, 32
    %vm48 = vmand %vm46, %vm47
    %v49 = vsel %vm48, 1, 0
    %v50 = vcvt.s32.f32 %v49
    %vm51 = vcmp.ge.s32.totalorder %v45, 32
    %vm52 = vcmp.lt.s32.totalorder %v45, 64
    %vm53 = vmand %vm51, %vm52
    %v54 = vsel %vm53, 1, 0
    %v55 = vcvt.s32.f32 %v54
    %vm56 = vcmp.ge.s32.totalorder %v45, 64
    %vm57 = vcmp.lt.s32.totalorder %v45, 96
    %vm58 = vmand %vm56, %vm57
    %v59 = vsel %vm58, 1, 0
    %v60 = vcvt.s32.f32 %v59
    %vm61 = vcmp.ge.s32.totalorder %v45, 96
    %vm62 = vcmp.lt.s32.totalorder %v45, 128
    %vm63 = vmand %vm61, %vm62
    %v64 = vsel %vm63, 1, 0
    %v65 = vcvt.s32.f32 %v64
    %v66 = vmul.f32 %v43, %v50
    %vm67 = vcmask 1043456
    %v68 = vsel %vm67, %v66, 0.0
    %69 = vadd.xlane.f32.xlu0 %v68
    %v70 = vpop.xlane.xlu0 %69
    %v71 = vmul.f32 %v50, %v70
    %v72 = vadd.f32 %v71, 0.0
    %v73 = vmul.f32 %v43, %v55
    %v74 = vsel %vm67, %v73, 0.0
    %75 = vadd.xlane.f32.xlu0 %v74
    %v76 = vpop.xlane.xlu0 %75
    %v77 = vmul.f32 %v55, %v76
    %v78 = vadd.f32 %v72, %v77
    %v79 = vmul.f32 %v43, %v60
    %v80 = vsel %vm67, %v79, 0.0
    %81 = vadd.xlane.f32.xlu0 %v80
    %v82 = vpop.xlane.xlu0 %81
    %v83 = vmul.f32 %v60, %v82
    %v84 = vadd.f32 %v78, %v83
    %v85 = vmul.f32 %v43, %v65
    %v86 = vsel %vm67, %v85, 0.0
    %87 = vadd.xlane.f32.xlu0 %v86
    %v88 = vpop.xlane.xlu0 %87
    %v89 = vmul.f32 %v65, %v88
    %v90 = vadd.f32 %v84, %v89
    %v91 = vmul.f32 %v90, 0.03125
    %v92 = vsub.f32 %v43, %v91
    %v93 = vmul.f32 %v92, %v92
    %v94 = vmul.f32 %v93, %v50
    %v95 = vsel %vm67, %v94, 0.0
    %96 = vadd.xlane.f32.xlu0 %v95
    %v97 = vpop.xlane.xlu0 %96
    %v98 = vmul.f32 %v50, %v97
    %v99 = vadd.f32 %v98, 0.0
    %v100 = vmul.f32 %v93, %v55
    %v101 = vsel %vm67, %v100, 0.0
    %102 = vadd.xlane.f32.xlu0 %v101
    %v103 = vpop.xlane.xlu0 %102
    %v104 = vmul.f32 %v55, %v103
    %v105 = vadd.f32 %v99, %v104
    %v106 = vmul.f32 %v93, %v60
    %v107 = vsel %vm67, %v106, 0.0
    %108 = vadd.xlane.f32.xlu0 %v107
    %v109 = vpop.xlane.xlu0 %108
    %v110 = vmul.f32 %v60, %v109
    %v111 = vadd.f32 %v105, %v110
    %v112 = vmul.f32 %v93, %v65
    %v113 = vsel %vm67, %v112, 0.0
    %114 = vadd.xlane.f32.xlu0 %v113
    %v115 = vpop.xlane.xlu0 %114
    %v116 = vmul.f32 %v65, %v115
    %v117 = vadd.f32 %v111, %v116
    %v118 = vmul.f32 %v117, 0.032258064
    %v119 = vadd.f32 %v118, 1e-06
    %v120 = vrsqrt.pop %v119
    %v121 = vmul.f32 %v120, %v119
    %v122 = vmul.f32 %v121, %v120
    %v123 = vmul.f32 0.5, %v122
    %v124 = vsub.f32 1.5, %v123
    %v125 = vmul.f32 %v120, %v124
    %vm126 = vweird.f32 %v119
    %vm127 = vweird.f32 %v120
    %vm128 = vmor %vm126, %vm127
    %v129 = vsel %vm128, %v120, %v125
    %v130 = vmul.f32 %v92, %v129
    %v131 = vld [vmem:[#allocation5] sm:$0x1]
    %v132 = vld [vmem:[%s2] sm:$0x1]
    %v134 = vperm.slane %v131, 0
    %v136 = vmul.f32 %v134, %v130
    %v138 = vperm.slane %v132, 0
    %v140 = vadd.f32 %v136, %v138
    %141 = vst [vmem:[#allocation7] sm:$0xf] %v140
    // Predicated region
    $region22: #{tpu_custom_call.1} parent=1 // pred_check
      _
    $region23: #{tpu_custom_call.1} parent=1 // pred_check_branch
      %143 = sbr.rel (0) target = $region25
    $region24: #{tpu_custom_call.1} parent=1 // pred_region
      %145 = vsyncadd [#allocation4], 0
      %s147 = sshll.u32 [#allocation7], 4
      %s148 = int_to_ptr.vmem [resolvable:$true] %s147
      %s149 = sshll.u32 %s3, 4
      %s150 = int_to_ptr.hbm [resolvable:$true] %s149
      %152 = dma.vmem_to_hbm [thread:$0]  %s148, 64, %s150, [#allocation4]
    $region25: #{tpu_custom_call.1} parent=1 // pred_fallthru
      _
    // Predicated region
    $region26: #{tpu_custom_call.1} parent=1 // pred_check
      _
    $region27: #{tpu_custom_call.1} parent=1 // pred_check_branch
      %154 = sbr.rel (0) target = $region29
    $region28: #{tpu_custom_call.1} parent=1 // pred_region
      %156 = dma.done [#allocation4], 64
    $region29: #{tpu_custom_call.1} parent=1 // pred_fallthru
      _
    %157 = vsyncpa [#allocation3], 1
    %158 = vsyncpa [#allocation6], 1
    %159 = vsyncpa [#allocation4], 1

</llo_original>
